<compile_context>
chip_gen: v7x
topology: tpu7x:2x2x1
jax: 0.10.0
libtpu: 0.0.40
codegen_flags: <defaults>
</compile_context>

<pallas_src>
import functools

import jax
import jax.numpy as jnp
from jax.experimental import pallas as pl
from jax.experimental.pallas import tpu as pltpu

_LANES = 128
_SUBLANES = 8
_BLOCK_ROWS = 2048  # (2048, 128) f32 block = 1 MiB per buffer.


def _sign_kernel(x_ref, o_ref):
    # SignSTE.forward == torch.sign
    o_ref[...] = jnp.sign(x_ref[...]).astype(o_ref.dtype)


def _stochastic_tpu_kernel(seed_ref, x_ref, o_ref, *, use_sigmoid: bool):
    # On-chip hardware PRNG: only x is read from HBM, only the output written.
    pltpu.prng_seed(seed_ref[0] + pl.program_id(0))
    bits = pltpu.prng_random_bits(x_ref.shape)
    bits = pltpu.bitcast(bits, jnp.uint32)  # force logical shift semantics
    # Uniform in [0, 1): top 24 bits scaled by 2^-24 (matches torch.rand range).
    u = (bits >> 8).astype(jnp.float32) * jnp.float32(1.0 / (1 << 24))

    x = x_ref[...].astype(jnp.float32)
    if use_sigmoid:
        x = jax.nn.sigmoid(x)
    o_ref[...] = (u <= x).astype(o_ref.dtype)


def _stochastic_uniform_kernel(x_ref, u_ref, o_ref, *, use_sigmoid: bool):
    # Portable fallback path: uniforms are generated outside the kernel.
    x = x_ref[...].astype(jnp.float32)
    if use_sigmoid:
        x = jax.nn.sigmoid(x)
    o_ref[...] = (u_ref[...] <= x).astype(o_ref.dtype)


def stochastic(x, seed: int = 0, *, use_ste: bool = False, use_sigmoid: bool = False):
    """JAX/Pallas equivalent of Stochastic(use_ste, use_sigmoid).forward(x)."""
    orig_shape = x.shape
    orig_dtype = x.dtype

    n = x.size
    if n == 0:
        return x

    # Flatten row-major into a (rows, 128) slab; pad ONLY when the size is not
    # already a multiple of one (8, 128) vreg tile (avoids an extra HBM pass).
    vreg_elems = _SUBLANES * _LANES
    n_pad = ((n + vreg_elems - 1) // vreg_elems) * vreg_elems
    flat = jnp.ravel(x)  # keep native dtype; no wrapper-side promotion to f32
    if n_pad != n:
        flat = jnp.pad(flat, (0, n_pad - n))
    x2d = flat.reshape(-1, _LANES)
    rows = x2d.shape[0]

    block_rows = min(_BLOCK_ROWS, rows)  # rows is a multiple of 8, so block_rows is too
    grid = (pl.cdiv(rows, block_rows),)

    blk = pl.BlockSpec((block_rows, _LANES), lambda i: (i, 0))
    out_shape = jax.ShapeDtypeStruct((rows, _LANES), orig_dtype)
    cparams = pltpu.CompilerParams(
        dimension_semantics=("parallel",),  # lets v7x shard the grid across both TCs
    )

    if use_ste:
        out2d = pl.pallas_call(
            _sign_kernel,
            out_shape=out_shape,
            grid=grid,
            in_specs=[blk],
            out_specs=blk,
            compiler_params=cparams,
        )(x2d)
    elif jax.default_backend() == "tpu":
        kernel = functools.partial(_stochastic_tpu_kernel, use_sigmoid=use_sigmoid)
        seed_arr = jnp.array([seed], dtype=jnp.int32)
        out2d = pl.pallas_call(
            kernel,
            out_shape=out_shape,
            grid_spec=pltpu.PrefetchScalarGridSpec(
                num_scalar_prefetch=1,
                grid=grid,
                in_specs=[pl.BlockSpec((block_rows, _LANES), lambda i, seed: (i, 0))],
                out_specs=pl.BlockSpec((block_rows, _LANES), lambda i, seed: (i, 0)),
            ),
            compiler_params=cparams,
        )(seed_arr, x2d)
    else:
        # Non-TPU / interpret backend: pltpu.prng_seed has no CPU lowering, so
        # draw the uniforms with jax.random and stream them through the kernel.
        u2d = jax.random.uniform(
            jax.random.PRNGKey(seed), (rows, _LANES), dtype=jnp.float32
        )
        kernel = functools.partial(_stochastic_uniform_kernel, use_sigmoid=use_sigmoid)
        out2d = pl.pallas_call(
            kernel,
            out_shape=out_shape,
            grid=grid,
            in_specs=[blk, blk],
            out_specs=blk,
            compiler_params=cparams,
        )(x2d, u2d)

    out = out2d.reshape(-1)
    if n_pad != n:
        out = out[:n]
    return out.reshape(orig_shape)


# TODO(synk): only the forward pass is implemented; SignSTE's straight-through
# gradient (backward) is outside the scope of this kernel.


if __name__ == "__main__":
    key = jax.random.PRNGKey(0)
    # Shapes consistent with a generic NCHW activation: batch=2, channels=4, 16x16.
    x = jax.random.normal(key, (2, 4, 16, 16), dtype=jnp.float32)

    # Default mode: (rand <= x).type_as(x)
    y_default = jax.block_until_ready(stochastic(x, seed=0))
    assert y_default.shape == x.shape and y_default.dtype == x.dtype
    assert bool(jnp.all((y_default == 0.0) | (y_default == 1.0)))
    # x < 0 must always produce 0 (rand in [0,1) can never be <= negative x)
    assert bool(jnp.all(jnp.where(x < 0.0, y_default == 0.0, True)))
    # x >= 1 must always produce 1 (rand in [0,1) is always <= x)
    assert bool(jnp.all(jnp.where(x >= 1.0, y_default == 1.0, True)))

    # use_sigmoid=True: binarize sigmoid(x)
    y_sig = jax.block_until_ready(stochastic(x, seed=1, use_sigmoid=True))
    assert bool(jnp.all((y_sig == 0.0) | (y_sig == 1.0)))

    # use_ste=True: sign(x)
    y_ste = jax.block_until_ready(stochastic(x, use_ste=True))
    assert bool(jnp.all(y_ste == jnp.sign(x)))

    print("KERNEL_OK")
</pallas_src>

<mosaic_0001>
module attributes {stable_mosaic.version = 11 : i64} {
  func.func @_stochastic_uniform_kernel(%arg0: i32, %arg1: memref<16x128xf32, #tpu.memory_space<vmem>>, %arg2: memref<16x128xf32, #tpu.memory_space<vmem>>, %arg3: memref<16x128xf32, #tpu.memory_space<vmem>>) attributes {dimension_semantics = [#tpu.dimension_semantics<parallel>], iteration_bounds = array<i64: 1>, scalar_prefetch = 0 : i64, scratch_operands = 0 : i64, tpu.core_type = #tpu.core_type<tc>, window_params = [{transform_indices = @transform_0, window_bounds = array<i64: 16, 128>}, {transform_indices = @transform_1, window_bounds = array<i64: 16, 128>}, {transform_indices = @transform_2, window_bounds = array<i64: 16, 128>}]} {
    %c0 = arith.constant 0 : index
    %c0_0 = arith.constant 0 : index
    %0 = vector.load %arg1[%c0, %c0_0] : memref<16x128xf32, #tpu.memory_space<vmem>>, vector<16x128xf32>
    %c0_1 = arith.constant 0 : index
    %c0_2 = arith.constant 0 : index
    %1 = vector.load %arg2[%c0_1, %c0_2] : memref<16x128xf32, #tpu.memory_space<vmem>>, vector<16x128xf32>
    %2 = arith.cmpf ole, %1, %0 : vector<16x128xf32>
    %3 = arith.extui %2 : vector<16x128xi1> to vector<16x128xi32>
    %4 = arith.sitofp %3 : vector<16x128xi32> to vector<16x128xf32>
    %c0_3 = arith.constant 0 : index
    %c0_4 = arith.constant 0 : index
    %5 = vector.load %arg3[%c0_3, %c0_4] : memref<16x128xf32, #tpu.memory_space<vmem>>, vector<16x128xf32>
    tpu.vector_store %arg3[%c0_3, %c0_4], %4 {strides = array<i32>} : memref<16x128xf32, #tpu.memory_space<vmem>>, vector<16x128xf32>,
    return
  }
  func.func @transform_0(%arg0: i32) -> (i32, i32) {
    %c0_i32 = arith.constant 0 : i32
    %c0_i32_0 = arith.constant 0 : i32
    return %arg0, %c0_i32 : i32, i32
  }
  func.func @transform_1(%arg0: i32) -> (i32, i32) {
    %c0_i32 = arith.constant 0 : i32
    %c0_i32_0 = arith.constant 0 : i32
    return %arg0, %c0_i32 : i32, i32
  }
  func.func @transform_2(%arg0: i32) -> (i32, i32) {
    %c0_i32 = arith.constant 0 : i32
    %c0_i32_0 = arith.constant 0 : i32
    return %arg0, %c0_i32 : i32, i32
  }
}

</mosaic_0001>

<llo_original>
// kernel: tpu_custom_call.1
$region0: #{tpu_custom_call.1}
  #allocation0 [shape = 'u32[]', space=smem, size = 0x4, offset = 0x4, fixed_abs, tag = 'smem constant byte address 0x4 - core index']
  #allocation1 [shape = 'u32[144,128]{1,0:T(1,128)}', space=vmem, size = 0x12000, scoped, tag = 'internal scratch']
  %s0 = inlined_call_operand.hbm [shape: f32[16,128], index: 0, kind: input, shape index: {}]
  %s1 = inlined_call_operand.hbm [shape: f32[16,128], index: 1, kind: input, shape index: {}]
  %s2 = inlined_call_operand.hbm [shape: f32[16,128], index: 2, kind: output, shape index: {}]
  %s3 = sld [smem:[#allocation0]]
  $region26: #{tpu_custom_call.1} parent=0
    _
  %s5 = ssub.s32 1, %s3
  %s6 = scalar_select 0, %s5, %s3
  $region1: #{tpu_custom_call.1} parent=0
    #allocation2 [shape = 'u8[8192]{0}', space=vmem, size = 0x2000, scoped, tag = 'input window, operand 0, single buffered']
    #allocation3 [shape = 's32[1]{0}', space=sflag, size = 0x4, scoped, tag = 'scoped memory for tpu_custom_call.1']
    #allocation4 [shape = 's32[1]{0}', space=sflag, size = 0x4, scoped, tag = 'scoped memory for tpu_custom_call.1']
    #allocation5 [shape = 'u8[8192]{0}', space=vmem, size = 0x2000, scoped, tag = 'input window, operand 1, single buffered']
    #allocation6 [shape = 's32[1]{0}', space=sflag, size = 0x4, scoped, tag = 'scoped memory for tpu_custom_call.1']
    #allocation7 [shape = 'u8[8192]{0}', space=vmem, size = 0x2000, scoped, tag = 'output window, operand 0, single buffered']
    %7 = vsyncpa [#allocation3], 0
    %8 = vsyncpa [#allocation6], 0
    %9 = vsyncpa [#allocation4], 0
    // Predicated region
    $region2: #{tpu_custom_call.1} parent=1 // pred_check
      _
    $region3: #{tpu_custom_call.1} parent=1 // pred_check_branch
      %11 = sbr.rel (0) target = $region5
    $region4: #{tpu_custom_call.1} parent=1 // pred_region
      %s13 = ssub.s32 256, 256
      %14 = vsyncadd [#allocation3], %s13
      %s15 = sshll.u32 [#allocation2], 4
      %s16 = int_to_ptr.vmem [resolvable:$true] %s15
      %21 = dma.hbm_to_vmem [thread:$0]  %s0, 256, %s16, [#allocation3], 128, 128, 8
    $region5: #{tpu_custom_call.1} parent=1 // pred_fallthru
      _
    // Predicated region
    $region6: #{tpu_custom_call.1} parent=1 // pred_check
      _
    $region7: #{tpu_custom_call.1} parent=1 // pred_check_branch
      %23 = sbr.rel (0) target = $region9
    $region8: #{tpu_custom_call.1} parent=1 // pred_region
      %s25 = ssub.s32 256, 256
      %26 = vsyncadd [#allocation6], %s25
      %s27 = sshll.u32 [#allocation5], 4
      %s28 = int_to_ptr.vmem [resolvable:$true] %s27
      %33 = dma.hbm_to_vmem [thread:$0]  %s1, 256, %s28, [#allocation6], 128, 128, 8
    $region9: #{tpu_custom_call.1} parent=1 // pred_fallthru
      _
    // Predicated region
    $region10: #{tpu_custom_call.1} parent=1 // pred_check
      _
    $region11: #{tpu_custom_call.1} parent=1 // pred_check_branch
      %35 = sbr.rel (0) target = $region13
    $region12: #{tpu_custom_call.1} parent=1 // pred_region
      %36 = dma.done [#allocation3], 256
    $region13: #{tpu_custom_call.1} parent=1 // pred_fallthru
      _
    // Predicated region
    $region14: #{tpu_custom_call.1} parent=1 // pred_check
      _
    $region15: #{tpu_custom_call.1} parent=1 // pred_check_branch
      %38 = sbr.rel (0) target = $region17
    $region16: #{tpu_custom_call.1} parent=1 // pred_region
      %39 = dma.done [#allocation6], 256
    $region17: #{tpu_custom_call.1} parent=1 // pred_fallthru
      _
    %v40 = vld [vmem:[#allocation2] sm:$0xff]
    %v41 = vld [vmem:[#allocation2 + $0x8] sm:$0xff]
    %v42 = vld [vmem:[#allocation5] sm:$0xff]
    %v43 = vld [vmem:[#allocation5 + $0x8] sm:$0xff]
    %vm44 = vcmp.le.f32.partialorder %v42, %v40
    %vm45 = vcmp.le.f32.partialorder %v43, %v41
    %v46 = vsel %vm44, 1, 0
    %v47 = vsel %vm45, 1, 0
    %v48 = vcvt.s32.f32 %v46
    %v49 = vcvt.s32.f32 %v47
    %50 = vst [vmem:[#allocation7] sm:$0xff] %v48
    %51 = vst [vmem:[#allocation7 + $0x8] sm:$0xff] %v49
    // Predicated region
    $region18: #{tpu_custom_call.1} parent=1 // pred_check
      _
    $region19: #{tpu_custom_call.1} parent=1 // pred_check_branch
      %53 = sbr.rel (0) target = $region21
    $region20: #{tpu_custom_call.1} parent=1 // pred_region
      %s55 = ssub.s32 256, 256
      %56 = vsyncadd [#allocation4], %s55
      %s57 = sshll.u32 [#allocation7], 4
      %s58 = int_to_ptr.vmem [resolvable:$true] %s57
      %63 = dma.vmem_to_hbm [thread:$0]  %s58, 256, %s2, [#allocation4], 128, 128, 8
    $region21: #{tpu_custom_call.1} parent=1 // pred_fallthru
      _
    // Predicated region
    $region22: #{tpu_custom_call.1} parent=1 // pred_check
      _
    $region23: #{tpu_custom_call.1} parent=1 // pred_check_branch
      %65 = sbr.rel (0) target = $region25
    $region24: #{tpu_custom_call.1} parent=1 // pred_region
      %66 = dma.done [#allocation4], 256
    $region25: #{tpu_custom_call.1} parent=1 // pred_fallthru
      _
    %67 = vsyncpa [#allocation3], 1
    %68 = vsyncpa [#allocation6], 1
    %69 = vsyncpa [#allocation4], 1

</llo_original>
